<compile_context>
chip_gen: v7x
topology: tpu7x:2x2x1
jax: 0.10.0
libtpu: 0.0.40
codegen_flags: <defaults>
</compile_context>

<pallas_src>
import functools

import jax
import jax.numpy as jnp
from jax.experimental import pallas as pl
from jax.experimental.pallas import tpu as pltpu

EPS = 1e-6  # torch.nn.functional.pairwise_distance default eps


def _round_up(x, m):
    return (x + m - 1) // m * m


def _triplet_kernel(a_ref, p_ref, n_ref, out_ref, acc_ref, *, margin, b_true):
    s = pl.program_id(0)            # parallel split (megacore on v7x)
    i = pl.program_id(1)            # batch-tile sweep within the split
    n_tiles = pl.num_programs(1)
    tb = a_ref.shape[0]

    @pl.when(i == 0)
    def _():
        acc_ref[...] = jnp.zeros_like(acc_ref)

    a = a_ref[...].astype(jnp.float32)
    p = p_ref[...].astype(jnp.float32)
    n = n_ref[...].astype(jnp.float32)

    # pairwise_distance: L2 norm of (x1 - x2 + eps) along the feature axis.
    dp = jnp.sqrt(jnp.sum((a - p + EPS) ** 2, axis=1, keepdims=True))  # (tb, 1)
    dn = jnp.sqrt(jnp.sum((a - n + EPS) ** 2, axis=1, keepdims=True))  # (tb, 1)
    losses = jnp.maximum(dp - dn + margin, 0.0)                        # (tb, 1)

    # Mask padded rows: padding gathers row 0, which would otherwise contribute
    # relu(margin) > 0 to the sum.
    row = jax.lax.broadcasted_iota(jnp.int32, (tb, 1), 0)
    gidx = (s * n_tiles + i) * tb + row
    losses = jnp.where(gidx < b_true, losses, 0.0)

    # Per-row accumulation (pure VPU add); single sublane reduce at the end.
    acc_ref[...] += losses

    @pl.when(i == n_tiles - 1)
    def _():
        total = jnp.sum(acc_ref[...], keepdims=True)                   # (1, 1)
        out_ref[...] = jnp.broadcast_to(total, out_ref.shape)          # (8, 128)


def triplet_loss_minibatch(outputs, anchors, positives, negatives, margin,
                           size_average=True, *, tb=None, n_splits=None):
    """outputs: [N, D] float32/bfloat16; anchors/positives/negatives: [B] int32."""
    B = anchors.shape[0]
    D = outputs.shape[1]
    bytes_per_el = jnp.dtype(outputs.dtype).itemsize

    # --- batch tile: as large as a conservative, cross-generation VMEM budget
    # allows (3 inputs x 2 pipeline buffers x tb x D x itemsize <= ~8 MiB, well
    # under v5e's 16 MiB / v6e-v7x's 32 MiB default scoped VMEM).
    if tb is None:
        budget = 8 * 1024 * 1024
        tb = budget // (3 * 2 * D * bytes_per_el)
        tb = min(1024, max(8, (tb // 8) * 8))
        tb = min(tb, _round_up(B, 8))
    tb = max(8, _round_up(int(tb), 8))

    n_tiles = -(-B // tb)
    if n_splits is None:
        # Use both TensorCores on v7x when there is more than one tile of work.
        n_splits = 2 if n_tiles >= 2 else 1
    tiles_per_split = -(-n_tiles // n_splits)
    b_pad = n_splits * tiles_per_split * tb

    # Gather stays in plain JAX (D is small; per-row in-kernel DMA gather would
    # not pay).  Pad the index vectors so the gathered arrays are tile-aligned;
    # the kernel masks the padded rows.
    def pad_idx(idx):
        idx = idx.astype(jnp.int32)
        if b_pad != B:
            idx = jnp.pad(idx, (0, b_pad - B))
        return idx

    a = jnp.take(outputs, pad_idx(anchors), axis=0)    # (b_pad, D)
    p = jnp.take(outputs, pad_idx(positives), axis=0)  # (b_pad, D)
    n = jnp.take(outputs, pad_idx(negatives), axis=0)  # (b_pad, D)

    kernel = functools.partial(_triplet_kernel, margin=float(margin), b_true=B)

    in_map = lambda s, i: (s * tiles_per_split + i, 0)
    partials = pl.pallas_call(
        kernel,
        out_shape=jax.ShapeDtypeStruct((n_splits * 8, 128), jnp.float32),
        grid_spec=pltpu.PrefetchScalarGridSpec(
            num_scalar_prefetch=0,
            grid=(n_splits, tiles_per_split),
            in_specs=[
                pl.BlockSpec((tb, D), in_map),
                pl.BlockSpec((tb, D), in_map),
                pl.BlockSpec((tb, D), in_map),
            ],
            # One (8,128)-aligned partial-sum block per split (safe layout on
            # all generations); wrapper sums the per-split scalars.
            out_specs=pl.BlockSpec((8, 128), lambda s, i: (s, 0)),
            scratch_shapes=[pltpu.VMEM((tb, 1), jnp.float32)],
        ),
        compiler_params=pltpu.CompilerParams(
            dimension_semantics=("parallel", "arbitrary"),
            vmem_limit_bytes=32 * 1024 * 1024,
        ),
    )(a, p, n)

    total = jnp.sum(partials[0::8, 0])
    denom = float(B) if size_average else 1.0
    return total / denom


def _reference(outputs, anchors, positives, negatives, margin, size_average=True):
    a = outputs[anchors]
    p = outputs[positives]
    n = outputs[negatives]
    dp = jnp.sqrt(jnp.sum((a - p + EPS) ** 2, axis=1))
    dn = jnp.sqrt(jnp.sum((a - n + EPS) ** 2, axis=1))
    losses = jnp.maximum(dp - dn + margin, 0.0)
    return losses.mean() if size_average else losses.sum()


if __name__ == "__main__":
    key = jax.random.PRNGKey(0)
    k_emb, k_a, k_p, k_n = jax.random.split(key, 4)

    N, D, B = 16, 128, 10          # N embeddings of dim D, B triplets (B not a tile multiple)
    margin = 1.0

    outputs = jax.random.normal(k_emb, (N, D), dtype=jnp.float32)
    anchors = jax.random.randint(k_a, (B,), 0, N, dtype=jnp.int32)
    positives = jax.random.randint(k_p, (B,), 0, N, dtype=jnp.int32)
    negatives = jax.random.randint(k_n, (B,), 0, N, dtype=jnp.int32)

    ref_mean = _reference(outputs, anchors, positives, negatives, margin)
    ref_sum = _reference(outputs, anchors, positives, negatives, margin,
                         size_average=False)

    # Default tiling path (single split, padded+masked rows).
    loss = triplet_loss_minibatch(outputs, anchors, positives, negatives, margin)
    loss = jax.block_until_ready(loss)
    assert jnp.allclose(loss, ref_mean, rtol=1e-5, atol=1e-5), (loss, ref_mean)

    # Exercise the 2-way "parallel" split (tb=8 -> 2 tiles -> 2 splits) + masking.
    loss2 = triplet_loss_minibatch(outputs, anchors, positives, negatives, margin,
                                   tb=8)
    loss2 = jax.block_until_ready(loss2)
    assert jnp.allclose(loss2, ref_mean, rtol=1e-5, atol=1e-5), (loss2, ref_mean)

    # size_average=False path.
    loss3 = triplet_loss_minibatch(outputs, anchors, positives, negatives, margin,
                                   size_average=False)
    loss3 = jax.block_until_ready(loss3)
    assert jnp.allclose(loss3, ref_sum, rtol=1e-5, atol=1e-5), (loss3, ref_sum)

    print("KERNEL_OK")
</pallas_src>

<mosaic_0001>
module attributes {stable_mosaic.version = 11 : i64} {
  func.func @_triplet_kernel(%arg0: i32, %arg1: i32, %arg2: memref<16x128xf32, #tpu.memory_space<vmem>>, %arg3: memref<16x128xf32, #tpu.memory_space<vmem>>, %arg4: memref<16x128xf32, #tpu.memory_space<vmem>>, %arg5: memref<8x128xf32, #tpu.memory_space<vmem>>, %arg6: memref<16x1xf32, #tpu.memory_space<vmem>>) attributes {dimension_semantics = [#tpu.dimension_semantics<parallel>, #tpu.dimension_semantics<arbitrary>], iteration_bounds = array<i64: 1, 1>, scalar_prefetch = 0 : i64, scratch_operands = 1 : i64, tpu.core_type = #tpu.core_type<tc>, window_params = [{transform_indices = @transform_0, window_bounds = array<i64: 16, 128>}, {transform_indices = @transform_1, window_bounds = array<i64: 16, 128>}, {transform_indices = @transform_2, window_bounds = array<i64: 16, 128>}, {transform_indices = @transform_3, window_bounds = array<i64: 8, 128>}]} {
    %c0_i32 = arith.constant 0 : i32
    %0 = arith.cmpi eq, %arg1, %c0_i32 : i32
    %1 = arith.extui %0 : i1 to i32
    %c0_i32_0 = arith.constant 0 : i32
    %2 = arith.cmpi ne, %1, %c0_i32_0 : i32
    scf.if %2 {
      %cst_18 = arith.constant 0.000000e+00 : f32
      %41 = vector.broadcast %cst_18 : f32 to vector<16x1xf32>
      %c0_19 = arith.constant 0 : index
      %c0_20 = arith.constant 0 : index
      %42 = vector.load %arg6[%c0_19, %c0_20] : memref<16x1xf32, #tpu.memory_space<vmem>>, vector<16x1xf32>
      tpu.vector_store %arg6[%c0_19, %c0_20], %41 {strides = array<i32>} : memref<16x1xf32, #tpu.memory_space<vmem>>, vector<16x1xf32>,
    } else {
    }
    %c0 = arith.constant 0 : index
    %c0_1 = arith.constant 0 : index
    %3 = vector.load %arg2[%c0, %c0_1] : memref<16x128xf32, #tpu.memory_space<vmem>>, vector<16x128xf32>
    %c0_2 = arith.constant 0 : index
    %c0_3 = arith.constant 0 : index
    %4 = vector.load %arg3[%c0_2, %c0_3] : memref<16x128xf32, #tpu.memory_space<vmem>>, vector<16x128xf32>
    %c0_4 = arith.constant 0 : index
    %c0_5 = arith.constant 0 : index
    %5 = vector.load %arg4[%c0_4, %c0_5] : memref<16x128xf32, #tpu.memory_space<vmem>>, vector<16x128xf32>
    %6 = arith.subf %3, %4 : vector<16x128xf32>
    %cst = arith.constant 9.99999997E-7 : f32
    %7 = vector.broadcast %cst : f32 to vector<16x128xf32>
    %8 = arith.addf %6, %7 : vector<16x128xf32>
    %9 = arith.mulf %8, %8 : vector<16x128xf32>
    %cst_6 = arith.constant dense<0.000000e+00> : vector<16xf32>
    %10 = vector.multi_reduction <add>, %9, %cst_6 [1] : vector<16x128xf32> to vector<16xf32>
    %11 = vector.shape_cast %10 : vector<16xf32> to vector<16x1xf32>
    %12 = math.sqrt %11 : vector<16x1xf32>
    %13 = arith.subf %3, %5 : vector<16x128xf32>
    %cst_7 = arith.constant 9.99999997E-7 : f32
    %14 = vector.broadcast %cst_7 : f32 to vector<16x128xf32>
    %15 = arith.addf %13, %14 : vector<16x128xf32>
    %16 = arith.mulf %15, %15 : vector<16x128xf32>
    %cst_8 = arith.constant dense<0.000000e+00> : vector<16xf32>
    %17 = vector.multi_reduction <add>, %16, %cst_8 [1] : vector<16x128xf32> to vector<16xf32>
    %18 = vector.shape_cast %17 : vector<16xf32> to vector<16x1xf32>
    %19 = math.sqrt %18 : vector<16x1xf32>
    %20 = arith.subf %12, %19 : vector<16x1xf32>
    %cst_9 = arith.constant 1.000000e+00 : f32
    %21 = vector.broadcast %cst_9 : f32 to vector<16x1xf32>
    %22 = arith.addf %20, %21 : vector<16x1xf32>
    %cst_10 = arith.constant 0.000000e+00 : f32
    %23 = vector.broadcast %cst_10 : f32 to vector<16x1xf32>
    %24 = arith.maximumf %22, %23 : vector<16x1xf32>
    %25 = tpu.iota {dimensions = array<i32: 0>} : vector<16x1xi32>
    %c1_i32 = arith.constant 1 : i32
    %26 = arith.muli %arg0, %c1_i32 : i32
    %27 = arith.addi %26, %arg1 : i32
    %c16_i32 = arith.constant 16 : i32
    %28 = arith.muli %27, %c16_i32 : i32
    %29 = vector.broadcast %28 : i32 to vector<16x1xi32>
    %30 = arith.addi %29, %25 : vector<16x1xi32>
    %c10_i32 = arith.constant 10 : i32
    %31 = vector.broadcast %c10_i32 : i32 to vector<16x1xi32>
    %32 = arith.cmpi slt, %30, %31 : vector<16x1xi32>
    %cst_11 = arith.constant 0.000000e+00 : f32
    %33 = vector.broadcast %cst_11 : f32 to vector<16x1xf32>
    %34 = arith.select %32, %24, %33 : vector<16x1xi1>, vector<16x1xf32>
    %c0_12 = arith.constant 0 : index
    %c0_13 = arith.constant 0 : index
    %35 = vector.load %arg6[%c0_12, %c0_13] : memref<16x1xf32, #tpu.memory_space<vmem>>, vector<16x1xf32>
    %36 = arith.addf %35, %34 : vector<16x1xf32>
    %c0_14 = arith.constant 0 : index
    %c0_15 = arith.constant 0 : index
    %37 = vector.load %arg6[%c0_14, %c0_15] : memref<16x1xf32, #tpu.memory_space<vmem>>, vector<16x1xf32>
    tpu.vector_store %arg6[%c0_14, %c0_15], %36 {strides = array<i32>} : memref<16x1xf32, #tpu.memory_space<vmem>>, vector<16x1xf32>,
    %c0_i32_16 = arith.constant 0 : i32
    %38 = arith.cmpi eq, %arg1, %c0_i32_16 : i32
    %39 = arith.extui %38 : i1 to i32
    %c0_i32_17 = arith.constant 0 : i32
    %40 = arith.cmpi ne, %39, %c0_i32_17 : i32
    scf.if %40 {
      %c0_18 = arith.constant 0 : index
      %c0_19 = arith.constant 0 : index
      %41 = vector.load %arg6[%c0_18, %c0_19] : memref<16x1xf32, #tpu.memory_space<vmem>>, vector<16x1xf32>
      %42 = vector.shape_cast %41 : vector<16x1xf32> to vector<1x16x1xf32>
      %cst_20 = arith.constant dense<0.000000e+00> : vector<1xf32>
      %43 = vector.multi_reduction <add>, %42, %cst_20 [1, 2] : vector<1x16x1xf32> to vector<1xf32>
      %44 = vector.shape_cast %43 : vector<1xf32> to vector<1x1x1xf32>
      %45 = vector.extract %44[0, 0, 0] : f32 from vector<1x1x1xf32>
      %46 = vector.broadcast %45 : f32 to vector<1x1xf32>
      %47 = vector.shape_cast %46 : vector<1x1xf32> to vector<1x1xf32>
      %48 = vector.broadcast %47 : vector<1x1xf32> to vector<8x128xf32>
      %c0_21 = arith.constant 0 : index
      %c0_22 = arith.constant 0 : index
      %49 = vector.load %arg5[%c0_21, %c0_22] : memref<8x128xf32, #tpu.memory_space<vmem>>, vector<8x128xf32>
      tpu.vector_store %arg5[%c0_21, %c0_22], %48 {strides = array<i32>} : memref<8x128xf32, #tpu.memory_space<vmem>>, vector<8x128xf32>,
    } else {
    }
    return
  }
  func.func @transform_0(%arg0: i32, %arg1: i32) -> (i32, i32) {
    %c1_i32 = arith.constant 1 : i32
    %0 = arith.muli %arg0, %c1_i32 : i32
    %1 = arith.addi %0, %arg1 : i32
    %c0_i32 = arith.constant 0 : i32
    %c0_i32_0 = arith.constant 0 : i32
    return %1, %c0_i32 : i32, i32
  }
  func.func @transform_1(%arg0: i32, %arg1: i32) -> (i32, i32) {
    %c1_i32 = arith.constant 1 : i32
    %0 = arith.muli %arg0, %c1_i32 : i32
    %1 = arith.addi %0, %arg1 : i32
    %c0_i32 = arith.constant 0 : i32
    %c0_i32_0 = arith.constant 0 : i32
    return %1, %c0_i32 : i32, i32
  }
  func.func @transform_2(%arg0: i32, %arg1: i32) -> (i32, i32) {
    %c1_i32 = arith.constant 1 : i32
    %0 = arith.muli %arg0, %c1_i32 : i32
    %1 = arith.addi %0, %arg1 : i32
    %c0_i32 = arith.constant 0 : i32
    %c0_i32_0 = arith.constant 0 : i32
    return %1, %c0_i32 : i32, i32
  }
  func.func @transform_3(%arg0: i32, %arg1: i32) -> (i32, i32) {
    %c0_i32 = arith.constant 0 : i32
    %c0_i32_0 = arith.constant 0 : i32
    return %arg0, %c0_i32 : i32, i32
  }
}

</mosaic_0001>

<llo_original>
// kernel: tpu_custom_call.1
$region0: #{tpu_custom_call.1}
  #allocation0 [shape = 'u32[]', space=smem, size = 0x4, offset = 0x4, fixed_abs, tag = 'smem constant byte address 0x4 - core index']
  #allocation1 [shape = 'u32[144,128]{1,0:T(1,128)}', space=vmem, size = 0x12000, scoped, tag = 'internal scratch']
  #allocation2 [shape = 'f32[16,1]{1,0:T(8,128)}', space=vmem, size = 0x2000, scoped, tag = 'scratch operand']
  %s0 = inlined_call_operand.hbm [shape: f32[16,128], index: 0, kind: input, shape index: {}]
  %s1 = inlined_call_operand.hbm [shape: f32[16,128], index: 1, kind: input, shape index: {}]
  %s2 = inlined_call_operand.hbm [shape: f32[16,128], index: 2, kind: input, shape index: {}]
  %s3 = inlined_call_operand.hbm [shape: f32[8,128], index: 3, kind: output, shape index: {}]
  %s4 = sld [smem:[#allocation0]]
  $region42: #{tpu_custom_call.1} parent=0
    _
  %s6 = ssub.s32 1, %s4
  %s7 = scalar_select 0, %s6, %s4
  $region1: #{tpu_custom_call.1} parent=0
    #allocation3 [shape = 'u8[8192]{0}', space=vmem, size = 0x2000, scoped, tag = 'input window, operand 0, single buffered']
    #allocation4 [shape = 's32[1]{0}', space=sflag, size = 0x4, scoped, tag = 'scoped memory for tpu_custom_call.1']
    #allocation5 [shape = 's32[1]{0}', space=sflag, size = 0x4, scoped, tag = 'scoped memory for tpu_custom_call.1']
    #allocation6 [shape = 'u8[8192]{0}', space=vmem, size = 0x2000, scoped, tag = 'input window, operand 1, single buffered']
    #allocation7 [shape = 's32[1]{0}', space=sflag, size = 0x4, scoped, tag = 'scoped memory for tpu_custom_call.1']
    #allocation8 [shape = 'u8[8192]{0}', space=vmem, size = 0x2000, scoped, tag = 'input window, operand 2, single buffered']
    #allocation9 [shape = 'u8[4096]{0}', space=vmem, size = 0x1000, scoped, tag = 'output window, operand 0, single buffered']
    %8 = vsyncpa [#allocation4], 0
    %9 = vsyncpa [#allocation7], 0
    %10 = vsyncpa [#allocation5], 0
    // Predicated region
    $region2: #{tpu_custom_call.1} parent=1 // pred_check
      _
    $region3: #{tpu_custom_call.1} parent=1 // pred_check_branch
      %12 = sbr.rel (0) target = $region5
    $region4: #{tpu_custom_call.1} parent=1 // pred_region
      %s13 = sadd.s32 0, 0
      %s14 = smul.u32 2, %s13
      %s16 = ssub.s32 256, 256
      %17 = vsyncadd [#allocation4], %s16
      %s18 = smul.addr %s14, 128
      %s19 = scalar_lea.hbm %s0, %s18
      %s20 = sshll.u32 [#allocation3], 4
      %s21 = int_to_ptr.vmem [resolvable:$true] %s20
      %26 = dma.hbm_to_vmem [thread:$0]  %s19, 256, %s21, [#allocation4], 128, 128, 8
    $region5: #{tpu_custom_call.1} parent=1 // pred_fallthru
      _
    // Predicated region
    $region6: #{tpu_custom_call.1} parent=1 // pred_check
      _
    $region7: #{tpu_custom_call.1} parent=1 // pred_check_branch
      %28 = sbr.rel (0) target = $region9
    $region8: #{tpu_custom_call.1} parent=1 // pred_region
      %s29 = sadd.s32 0, 0
      %s30 = smul.u32 2, %s29
      %s32 = ssub.s32 256, 256
      %33 = vsyncadd [#allocation7], %s32
      %s34 = smul.addr %s30, 128
      %s35 = scalar_lea.hbm %s1, %s34
      %s36 = sshll.u32 [#allocation6], 4
      %s37 = int_to_ptr.vmem [resolvable:$true] %s36
      %42 = dma.hbm_to_vmem [thread:$0]  %s35, 256, %s37, [#allocation7], 128, 128, 8
    $region9: #{tpu_custom_call.1} parent=1 // pred_fallthru
      _
    // Predicated region
    $region10: #{tpu_custom_call.1} parent=1 // pred_check
      _
    $region11: #{tpu_custom_call.1} parent=1 // pred_check_branch
      %44 = sbr.rel (0) target = $region13
    $region12: #{tpu_custom_call.1} parent=1 // pred_region
      %s45 = sadd.s32 0, 0
      %s46 = smul.u32 2, %s45
      %s48 = ssub.s32 256, 256
      %49 = vsyncadd [#allocation7], %s48
      %s50 = smul.addr %s46, 128
      %s51 = scalar_lea.hbm %s2, %s50
      %s52 = sshll.u32 [#allocation8], 4
      %s53 = int_to_ptr.vmem [resolvable:$true] %s52
      %58 = dma.hbm_to_vmem [thread:$0]  %s51, 256, %s53, [#allocation7], 128, 128, 8
    $region13: #{tpu_custom_call.1} parent=1 // pred_fallthru
      _
    // Predicated region
    $region14: #{tpu_custom_call.1} parent=1 // pred_check
      _
    $region15: #{tpu_custom_call.1} parent=1 // pred_check_branch
      %60 = sbr.rel (0) target = $region17
    $region16: #{tpu_custom_call.1} parent=1 // pred_region
      %61 = dma.done [#allocation4], 256
    $region17: #{tpu_custom_call.1} parent=1 // pred_fallthru
      _
    // Predicated region
    $region18: #{tpu_custom_call.1} parent=1 // pred_check
      _
    $region19: #{tpu_custom_call.1} parent=1 // pred_check_branch
      %63 = sbr.rel (0) target = $region21
    $region20: #{tpu_custom_call.1} parent=1 // pred_region
      %64 = dma.done [#allocation7], 256
    $region21: #{tpu_custom_call.1} parent=1 // pred_fallthru
      _
    // Predicated region
    $region22: #{tpu_custom_call.1} parent=1 // pred_check
      _
    $region23: #{tpu_custom_call.1} parent=1 // pred_check_branch
      %66 = sbr.rel (0) target = $region25
    $region24: #{tpu_custom_call.1} parent=1 // pred_region
      %67 = dma.done [#allocation7], 256
    $region25: #{tpu_custom_call.1} parent=1 // pred_fallthru
      _
    %s68 = sadd.s32 0, 0
    %s69 = smul.u32 2, %s68
    %s70 = sadd.s32 0, 0
    %s71 = smul.u32 2, %s70
    %s72 = sadd.s32 0, 0
    %s73 = smul.u32 2, %s72
    %p74 = scmp.eq.s32.totalorder 0, 0
    // Predicated region
    $region26: #{tpu_custom_call.1} parent=1 // pred_check
      %p75 = pneg %p74
    $region27: #{tpu_custom_call.1} parent=1 // pred_check_branch
      %77 = sbr.rel (%p75) target = $region29
    $region28: #{tpu_custom_call.1} parent=1 // pred_region
      %vm78 = vcmask 7168
      %79 = vst.msk [vmem:[#allocation2] sm:$0xff] %vm78, 0.0
      %80 = vst.msk [vmem:[#allocation2 + $0x8] sm:$0xff] %vm78, 0.0
    $region29: #{tpu_custom_call.1} parent=1 // pred_fallthru
      _
    %v81 = vld [vmem:[#allocation3] sm:$0xff]
    %v82 = vld [vmem:[#allocation3 + $0x8] sm:$0xff]
    %v83 = vld [vmem:[#allocation6] sm:$0xff]
    %v84 = vld [vmem:[#allocation6 + $0x8] sm:$0xff]
    %v85 = vld [vmem:[#allocation8] sm:$0xff]
    %v86 = vld [vmem:[#allocation8 + $0x8] sm:$0xff]
    %v87 = vsub.f32 %v81, %v83
    %v88 = vsub.f32 %v82, %v84
    %v89 = vadd.f32 %v87, 1e-06
    %v90 = vadd.f32 %v88, 1e-06
    %v91 = vmul.f32 %v89, %v89
    %v92 = vmul.f32 %v90, %v90
    %93 = vadd.xlane.f32.xlu0 %v91
    %v94 = vpop.xlane.xlu0 %93
    %95 = vadd.xlane.f32.xlu0 %v92
    %v96 = vpop.xlane.xlu0 %95
    %v97 = vrsqrt.pop %v94
    %v98 = vmul.f32 %v94, %v97
    %vm99 = vcmp.eq.f32.partialorder %v94, inf
    %v100 = vsel %vm99, %v94, %v98
    %vm101 = vcmp.eq.f32.partialorder %v94, 0.0
    %v102 = vand.u32 %v94, 2147483648
    %v103 = vsel %vm101, %v102, %v100
    %v104 = vrsqrt.pop %v96
    %v105 = vmul.f32 %v96, %v104
    %vm106 = vcmp.eq.f32.partialorder %v96, inf
    %v107 = vsel %vm106, %v96, %v105
    %vm108 = vcmp.eq.f32.partialorder %v96, 0.0
    %v109 = vand.u32 %v96, 2147483648
    %v110 = vsel %vm108, %v109, %v107
    %v111 = vsub.f32 %v81, %v85
    %v112 = vsub.f32 %v82, %v86
    %v113 = vadd.f32 %v111, 1e-06
    %v114 = vadd.f32 %v112, 1e-06
    %v115 = vmul.f32 %v113, %v113
    %v116 = vmul.f32 %v114, %v114
    %117 = vadd.xlane.f32.xlu0 %v115
    %v118 = vpop.xlane.xlu0 %117
    %119 = vadd.xlane.f32.xlu0 %v116
    %v120 = vpop.xlane.xlu0 %119
    %v121 = vrsqrt.pop %v118
    %v122 = vmul.f32 %v118, %v121
    %vm123 = vcmp.eq.f32.partialorder %v118, inf
    %v124 = vsel %vm123, %v118, %v122
    %vm125 = vcmp.eq.f32.partialorder %v118, 0.0
    %v126 = vand.u32 %v118, 2147483648
    %v127 = vsel %vm125, %v126, %v124
    %v128 = vrsqrt.pop %v120
    %v129 = vmul.f32 %v120, %v128
    %vm130 = vcmp.eq.f32.partialorder %v120, inf
    %v131 = vsel %vm130, %v120, %v129
    %vm132 = vcmp.eq.f32.partialorder %v120, 0.0
    %v133 = vand.u32 %v120, 2147483648
    %v134 = vsel %vm132, %v133, %v131
    %v135 = vsub.f32 %v103, %v127
    %v136 = vsub.f32 %v110, %v134
    %v137 = vadd.f32 %v135, 1.0
    %v138 = vadd.f32 %v136, 1.0
    %v139 = vmax.f32 %v137, 0.0
    %v140 = vmax.f32 %v138, 0.0
    %v141 = vlaneseq
    %v142 = vshrl.u32 %v141, 7
    %v143 = vadd.s32 %v142, 8
    %s144 = sadd.s32 0, 0
    %s145 = smul.u32 %s144, 16
    %v146 = vstv %s145
    %v147 = vadd.s32 %v146, %v142
    %v148 = vadd.s32 %v146, %v143
    %vm149 = vcmp.lt.s32.totalorder %v147, 10
    %vm150 = vcmp.lt.s32.totalorder %v148, 10
    %v151 = vsel %vm149, %v139, 0.0
    %v152 = vsel %vm150, %v140, 0.0
    %v153 = vld [vmem:[#allocation2] sm:$0xff]
    %v154 = vld [vmem:[#allocation2 + $0x8] sm:$0xff]
    %v155 = vadd.f32 %v153, %v151
    %v156 = vadd.f32 %v154, %v152
    %vm157 = vcmask 7168
    %158 = vst.msk [vmem:[#allocation2] sm:$0xff] %vm157, %v155
    %159 = vst.msk [vmem:[#allocation2 + $0x8] sm:$0xff] %vm157, %v156
    // Predicated region
    $region30: #{tpu_custom_call.1} parent=1 // pred_check
      %p160 = pneg %p74
    $region31: #{tpu_custom_call.1} parent=1 // pred_check_branch
      %162 = sbr.rel (%p160) target = $region33
    $region32: #{tpu_custom_call.1} parent=1 // pred_region
      %v163 = vld [vmem:[#allocation2] sm:$0xff]
      %v164 = vld [vmem:[#allocation2 + $0x8] sm:$0xff]
      %v165 = vsel %vm157, %v163, 0.0
      %v166 = vsel %vm157, %v164, 0.0
      %v167 = vadd.f32 %v165, %v166
      %168 = vadd.xlane.f32.xlu0 %v167
      %v169 = vpop.xlane.xlu0 %168
      %v170 = vrot.slane %v169, 4
      %v171 = vadd.f32 %v169, %v170
      %v172 = vrot.slane %v171, 2
      %v173 = vadd.f32 %v171, %v172
      %v174 = vrot.slane %v173, 1
      %v175 = vadd.f32 %v173, %v174
      %s176 = vtos %v175
      %v177 = vstv %s176
      %178 = vst [vmem:[#allocation9] sm:$0xff] %v177
    $region33: #{tpu_custom_call.1} parent=1 // pred_fallthru
      _
    // Predicated region
    $region34: #{tpu_custom_call.1} parent=1 // pred_check
      _
    $region35: #{tpu_custom_call.1} parent=1 // pred_check_branch
      %180 = sbr.rel (0) target = $region37
    $region36: #{tpu_custom_call.1} parent=1 // pred_region
      %s182 = ssub.s32 128, 128
      %183 = vsyncadd [#allocation5], %s182
      %s185 = sshll.u32 [#allocation9], 4
      %s186 = int_to_ptr.vmem [resolvable:$true] %s185
      %188 = dma.vmem_to_hbm [thread:$0]  %s186, 128, %s3, [#allocation5]
    $region37: #{tpu_custom_call.1} parent=1 // pred_fallthru
      _
    // Predicated region
    $region38: #{tpu_custom_call.1} parent=1 // pred_check
      _
    $region39: #{tpu_custom_call.1} parent=1 // pred_check_branch
      %190 = sbr.rel (0) target = $region41
    $region40: #{tpu_custom_call.1} parent=1 // pred_region
      %191 = dma.done [#allocation5], 128
    $region41: #{tpu_custom_call.1} parent=1 // pred_fallthru
      _
    %192 = vsyncpa [#allocation4], 1
    %193 = vsyncpa [#allocation7], 1
    %194 = vsyncpa [#allocation5], 1

</llo_original>
